<compile_context>
chip_gen: v6e
topology: v6e:2x2x1
jax: 0.10.0
libtpu: 0.0.40
codegen_flags: <defaults>
</compile_context>

<pallas_src>
import functools

import numpy as np
import jax
import jax.numpy as jnp
from jax import lax
from jax.experimental import pallas as pl
from jax.experimental.pallas import tpu as pltpu


def _rup8(x: int) -> int:
    return ((x + 7) // 8) * 8


# --------------------------------------------------------------------------------
# in-kernel index matrices (pure VPU: iota + compares, no HBM traffic)
# --------------------------------------------------------------------------------
def _repeat_scatter_matrix(base, tr, b):
    """P[r, bb] = 1 iff (block_row_start + r) % B == bb  (torch `.repeat(N,1)` order).

    `base` is the scalar (t * TR) % B looked up from a tiny SMEM table, so no
    vector integer div/mod is needed - only compares against static multiples of B.
    """
    rr = lax.broadcasted_iota(jnp.int32, (tr, b), 0)
    bb = lax.broadcasted_iota(jnp.int32, (tr, b), 1)
    d = rr - bb + base                                  # in (-B, TR + B - 2]
    cond = d == 0
    for k in range(1, (tr + b - 2) // b + 1):
        cond = jnp.logical_or(cond, d == k * b)
    return jnp.where(cond, 1.0, 0.0)                    # (TR, B) float32


def _group_mask(rows, groups, n, *, groups_on_axis0):
    """Boolean membership 'row r belongs to group r // n' (groups are block-local)."""
    if groups_on_axis0:
        gg = lax.broadcasted_iota(jnp.int32, (groups, rows), 0)
        rr = lax.broadcasted_iota(jnp.int32, (groups, rows), 1)
    else:
        rr = lax.broadcasted_iota(jnp.int32, (rows, groups), 0)
        gg = lax.broadcasted_iota(jnp.int32, (rows, groups), 1)
    return jnp.logical_and(rr >= gg * n, rr < gg * n + n)


# --------------------------------------------------------------------------------
# Kernel A: embedding MLP + per-group mean
# --------------------------------------------------------------------------------
def _embed_kernel(N, B, TB, TR, H, d_nbr, d_self,
                  off_n, off_s, off_w1, off_bias, cdt,
                  base_ref, obs_n_ref, self_ref, wa_ref, e_ref, m_ref):
    f32 = jnp.float32
    dot = lambda a, b: jnp.dot(a.astype(cdt), b.astype(cdt),
                               preferred_element_type=f32)

    base = base_ref[pl.program_id(0)]                   # (t*TR) % B  (SMEM scalar)

    # static, 8-row-aligned slices out of the packed weight buffer
    w0n = wa_ref[off_n:off_n + d_nbr, :]                # (Dn, H)
    w0s = wa_ref[off_s:off_s + d_self, :]               # (Ds, H)
    w1 = wa_ref[off_w1:off_w1 + H, :]                   # (H, H)
    btail = wa_ref[off_bias:off_bias + 8, :]            # aligned (8, H) tail
    be0 = btail[0:1, :].astype(f32)
    be1 = btail[1:2, :].astype(f32)

    # self-obs projection computed at B rows, then scattered with the torch
    # `.repeat(N,1)` row order (one-hot matmul built in-kernel).
    P = _repeat_scatter_matrix(base, TR, B)
    self_term = dot(P, dot(self_ref[...], w0s))         # (TR, H)

    e1 = jnp.tanh(dot(obs_n_ref[...], w0n) + self_term + be0)
    e = jnp.tanh(dot(e1, w1) + be1)                     # (TR, H) f32

    # per-group (i // N) mean of the embeddings; 1/N folded into the matrix.
    gmean = jnp.where(_group_mask(TR, TB, N, groups_on_axis0=True), 1.0 / N, 0.0)

    e_ref[...] = e.astype(e_ref.dtype)
    m_ref[...] = dot(gmean, e).astype(m_ref.dtype)      # (TB, H)


# --------------------------------------------------------------------------------
# Kernel B: value MLP + attention MLP + grouped softmax + weighted sum
# --------------------------------------------------------------------------------
def _attend_kernel(N, B, TB, TR, H,
                   o_fbias, o_wv1, o_wa0m, o_wa1, o_tail, cdt,
                   base_ref, e_ref, m_ref, wf_ref, wr_ref, out_ref):
    f32 = jnp.float32
    dot = lambda a, b: jnp.dot(a.astype(cdt), b.astype(cdt),
                               preferred_element_type=f32)

    base = base_ref[pl.program_id(0)]
    e = e_ref[...]                                      # (TR, H)
    m = m_ref[...]                                      # (B, H)  (full, resident)

    # fused [wv0 | wa0e] matmul on e (doubles MXU lane utilisation); the fused
    # bias row [bv0 | ba0] is added before splitting the columns.
    ew = dot(e, wf_ref[0:H, :]) + wf_ref[o_fbias:o_fbias + 1, :].astype(f32)
    v0_pre = ew[:, 0:H]
    a0_pre = ew[:, H:2 * H]

    wv1 = wr_ref[o_wv1:o_wv1 + H, :]
    wa0m = wr_ref[o_wa0m:o_wa0m + H, :]
    wa1 = wr_ref[o_wa1:o_wa1 + H, :]
    tail = wr_ref[o_tail:o_tail + 8, :]                 # aligned (8, H) tail
    wa2_row = tail[0:1, :].astype(f32)                  # (1, H)  (= wa2^T)
    bv1 = tail[1:2, :].astype(f32)
    ba1 = tail[2:3, :].astype(f32)
    ba2 = tail[3:4, 0:1].astype(f32)                    # (1, 1)

    # mean-embedding contribution: project the (B,H) means first, then apply the
    # torch `.repeat(N,1)` scatter (no (TR,H) m_rep materialisation, and the
    # (.,H)x(H,H) matmul runs at B rows instead of TR rows).
    P = _repeat_scatter_matrix(base, TR, B)
    a0 = jnp.tanh(a0_pre + dot(P, dot(m, wa0m)))        # (TR, H)
    v = jnp.tanh(dot(jnp.tanh(v0_pre), wv1) + bv1)      # (TR, H) neighbor values
    a1 = jnp.tanh(dot(a0, wa1) + ba1)                   # (TR, H)

    # logits via a lane (XLU) reduction instead of an (H,1) MXU matmul.
    logits = jnp.sum(a1 * wa2_row, axis=-1, keepdims=True) + ba2    # (TR, 1)

    # grouped softmax over the N neighbours of each batch element, with a
    # per-group max shift (robust even for un-bounded logits).
    gmask = _group_mask(TR, TB, N, groups_on_axis0=False)           # (TR, TB)
    gmax = jnp.max(jnp.where(gmask, logits, -1e30), axis=0, keepdims=True)  # (1, TB)
    rowmax = jnp.sum(jnp.where(gmask, gmax, 0.0), axis=1, keepdims=True)    # (TR, 1)
    z = jnp.exp(logits - rowmax)                                            # (TR, 1)
    gsum = jnp.sum(jnp.where(gmask, z, 0.0), axis=0, keepdims=True)         # (1, TB)
    ginv = pl.reciprocal(gsum, approx=True)             # EUP, not a VPU f32 divide
    ginv = ginv * (2.0 - gsum * ginv)                   # 1 Newton step -> f32-exact
    w = z * jnp.sum(jnp.where(gmask, ginv, 0.0), axis=1, keepdims=True)     # (TR, 1)

    # weighted sum of neighbour values per batch element (group = i // N).
    gsum_mat = jnp.where(_group_mask(TR, TB, N, groups_on_axis0=True), 1.0, 0.0)
    out_ref[...] = dot(gsum_mat, w * v).astype(out_ref.dtype)       # (TB, H)


# --------------------------------------------------------------------------------
# host-side: one-time weight packing (outside the per-step path)
# --------------------------------------------------------------------------------
def pack_params(params, *, self_obs_dim, neighbor_obs_dim, neighbor_hidden_size,
                dtype=jnp.float32):
    """Pack the 15 tiny weight/bias tensors into 3 VMEM-resident buffers.

    `dtype` is the matmul operand dtype: float32 everywhere; bfloat16 is the
    recommended setting on v6e / v7x at large batch (accumulation stays f32 via
    preferred_element_type).  The softmax path stays in f32 regardless.
    """
    d_self, d_nbr, H = self_obs_dim, neighbor_obs_dim, neighbor_hidden_size
    c = lambda x: jnp.asarray(x, dtype)

    we0 = params["we0"]                     # (Ds + Dn, H): rows = [self | neighbor]
    w0_self, w0_nbr = we0[:d_self], we0[d_self:]
    wa0 = params["wa0"]                     # (2H, H): rows = [embedding | mean]
    wa0_e, wa0_m = wa0[:H], wa0[H:]

    # ---- kernel-A pack: we0_neigh, we0_self, we1, 8-row bias tail ----
    off_n = 0
    off_s = _rup8(d_nbr)
    off_w1 = off_s + _rup8(d_self)
    off_bias = off_w1 + _rup8(H)
    wa = jnp.zeros((off_bias + 8, H), dtype)
    wa = wa.at[off_n:off_n + d_nbr].set(c(w0_nbr))
    wa = wa.at[off_s:off_s + d_self].set(c(w0_self))
    wa = wa.at[off_w1:off_w1 + H].set(c(params["we1"]))
    wa = wa.at[off_bias + 0].set(c(params["be0"][0]))
    wa = wa.at[off_bias + 1].set(c(params["be1"][0]))

    # ---- kernel-B fused pack: [wv0 | wa0_e] + fused bias row [bv0 | ba0] ----
    o_fbias = _rup8(H)
    wf = jnp.zeros((o_fbias + 8, 2 * H), dtype)
    wf = wf.at[0:H, 0:H].set(c(params["wv0"]))
    wf = wf.at[0:H, H:2 * H].set(c(wa0_e))
    wf = wf.at[o_fbias, 0:H].set(c(params["bv0"][0]))
    wf = wf.at[o_fbias, H:2 * H].set(c(params["ba0"][0]))

    # ---- kernel-B rest pack: wv1, wa0_m, wa1, 8-row tail [wa2^T, bv1, ba1, ba2] ----
    o_wv1, o_wa0m, o_wa1 = 0, _rup8(H), 2 * _rup8(H)
    o_tail = 3 * _rup8(H)
    wr = jnp.zeros((o_tail + 8, H), dtype)
    wr = wr.at[o_wv1:o_wv1 + H].set(c(params["wv1"]))
    wr = wr.at[o_wa0m:o_wa0m + H].set(c(wa0_m))
    wr = wr.at[o_wa1:o_wa1 + H].set(c(params["wa1"]))
    wr = wr.at[o_tail + 0].set(c(params["wa2"][:, 0]))
    wr = wr.at[o_tail + 1].set(c(params["bv1"][0]))
    wr = wr.at[o_tail + 2].set(c(params["ba1"][0]))
    wr = wr.at[o_tail + 3, 0].set(c(params["ba2"])[0, 0])

    return dict(wa=wa, wf=wf, wr=wr,
                offsets_a=(off_n, off_s, off_w1, off_bias),
                offsets_b=(o_fbias, o_wv1, o_wa0m, o_wa1, o_tail),
                dims=(d_self, d_nbr, H),
                dtype=dtype)


# --------------------------------------------------------------------------------
# forward
# --------------------------------------------------------------------------------
def quad_neighborhood_encoder_attention(self_obs, obs, packed, *,
                                        num_use_neighbor_obs, block_groups=None):
    d_self, d_nbr, H = packed["dims"]
    cdt = packed["dtype"]
    N = num_use_neighbor_obs
    B = self_obs.shape[0]
    R = B * N

    # neighbor observations: row i -> (batch i // N, neighbor i % N).  No tile /
    # concat: the self-obs projection and its `.repeat(N,1)` order live in-kernel.
    obs_n = obs[:, d_self:d_self + d_nbr * N].reshape(R, d_nbr)

    # Row-block tiling: TB whole batch groups (TR = TB*N rows) per grid step, so
    # the per-group mean / softmax / weighted sum never straddle a block.
    if block_groups is None:
        cands = [tb for tb in range(8, B + 1, 8) if B % tb == 0 and tb * N <= 1024]
        block_groups = max(cands) if cands else B
    TB = block_groups
    if B % TB != 0:
        raise ValueError("block_groups must divide the batch size")
    if TB % 8 != 0 and TB != B:
        raise ValueError("block_groups must be a multiple of 8 (or equal the batch)")
    TR = TB * N
    NB = B // TB

    # tiny SMEM table of per-block offsets (t*TR) % B -> avoids in-kernel vector mod.
    base_tbl = jnp.asarray(np.array([(t * TR) % B for t in range(NB)], np.int32))

    isz = jnp.dtype(cdt).itemsize
    cparams = pltpu.CompilerParams(
        dimension_semantics=("parallel",),        # both v7x TensorCores get blocks
        vmem_limit_bytes=32 * 1024 * 1024,        # explicit budget, safe on v5e/v6e/v7x
    )

    # ---------------- kernel A: embeddings + per-group mean ----------------
    off_n, off_s, off_w1, off_bias = packed["offsets_a"]
    embed = functools.partial(_embed_kernel, N, B, TB, TR, H, d_nbr, d_self,
                              off_n, off_s, off_w1, off_bias, cdt)
    cost_a = pl.CostEstimate(
        flops=2 * R * (d_nbr * H + B * H + H * H + TB * H) + 2 * NB * B * d_self * H,
        transcendentals=2 * R * H,
        bytes_accessed=4 * (R * d_nbr + B * d_self + B * H)
        + R * H * isz + packed["wa"].size * isz,
    )
    e_hbm, m_hbm = pl.pallas_call(
        embed,
        out_shape=(jax.ShapeDtypeStruct((R, H), cdt),
                   jax.ShapeDtypeStruct((B, H), jnp.float32)),
        grid_spec=pltpu.PrefetchScalarGridSpec(
            num_scalar_prefetch=1,
            grid=(NB,),
            in_specs=[
                pl.BlockSpec((TR, d_nbr), lambda t, base: (t, 0)),
                pl.BlockSpec((B, d_self), lambda t, base: (0, 0)),
                pl.BlockSpec(packed["wa"].shape, lambda t, base: (0, 0)),
            ],
            out_specs=[
                pl.BlockSpec((TR, H), lambda t, base: (t, 0)),
                pl.BlockSpec((TB, H), lambda t, base: (t, 0)),
            ],
        ),
        compiler_params=cparams,
        cost_estimate=cost_a,
    )(base_tbl, obs_n, self_obs, packed["wa"])

    # ---------------- kernel B: values + attention + grouped softmax ----------------
    o_fbias, o_wv1, o_wa0m, o_wa1, o_tail = packed["offsets_b"]
    attend = functools.partial(_attend_kernel, N, B, TB, TR, H,
                               o_fbias, o_wv1, o_wa0m, o_wa1, o_tail, cdt)
    cost_b = pl.CostEstimate(
        flops=2 * R * (4 * H * H + B * H + TB * H) + 2 * NB * B * H * H,
        transcendentals=3 * R * H + R,
        bytes_accessed=R * H * isz + 2 * B * H * 4
        + (packed["wf"].size + packed["wr"].size) * isz,
    )
    out = pl.pallas_call(
        attend,
        out_shape=jax.ShapeDtypeStruct((B, H), jnp.float32),
        grid_spec=pltpu.PrefetchScalarGridSpec(
            num_scalar_prefetch=1,
            grid=(NB,),
            in_specs=[
                pl.BlockSpec((TR, H), lambda t, base: (t, 0)),
                pl.BlockSpec((B, H), lambda t, base: (0, 0)),
                pl.BlockSpec(packed["wf"].shape, lambda t, base: (0, 0)),
                pl.BlockSpec(packed["wr"].shape, lambda t, base: (0, 0)),
            ],
            out_specs=pl.BlockSpec((TB, H), lambda t, base: (t, 0)),
        ),
        compiler_params=cparams,
        cost_estimate=cost_b,
    )(base_tbl, e_hbm, m_hbm, packed["wf"], packed["wr"])
    return out


# --------------------------------------------------------------------------------
# parameter init (PyTorch nn.Linear default) and pure-JAX reference (torch semantics)
# --------------------------------------------------------------------------------
def _linear_init(key, fan_in, fan_out):
    kw, kb = jax.random.split(key)
    bound = 1.0 / (fan_in ** 0.5)
    w = jax.random.uniform(kw, (fan_in, fan_out), jnp.float32, -bound, bound)
    b = jax.random.uniform(kb, (1, fan_out), jnp.float32, -bound, bound)
    return w, b


def make_params(key, self_obs_dim, neighbor_obs_dim, hidden):
    din = self_obs_dim + neighbor_obs_dim
    layer_dims = {
        "e0": (din, hidden), "e1": (hidden, hidden),
        "v0": (hidden, hidden), "v1": (hidden, hidden),
        "a0": (2 * hidden, hidden), "a1": (hidden, hidden), "a2": (hidden, 1),
    }
    params = {}
    for name, (fi, fo) in layer_dims.items():
        key, sub = jax.random.split(key)
        w, b = _linear_init(sub, fi, fo)
        params["w" + name] = w
        params["b" + name] = b
    return params


def reference_forward(self_obs, obs, params, *, self_obs_dim, neighbor_obs_dim,
                      neighbor_hidden_size, num_use_neighbor_obs):
    B = self_obs.shape[0]
    N = num_use_neighbor_obs
    H = neighbor_hidden_size
    all_sz = neighbor_obs_dim * N

    obs_neighbors = obs[:, self_obs_dim:self_obs_dim + all_sz].reshape(-1, neighbor_obs_dim)
    self_obs_repeat = jnp.tile(self_obs, (N, 1))
    x = jnp.concatenate([self_obs_repeat, obs_neighbors], axis=1)

    e = jnp.tanh(x @ params["we0"] + params["be0"])
    e = jnp.tanh(e @ params["we1"] + params["be1"])
    v = jnp.tanh(e @ params["wv0"] + params["bv0"])
    v = jnp.tanh(v @ params["wv1"] + params["bv1"])

    m = jnp.mean(e.reshape(B, -1, H), axis=1)
    m_rep = jnp.tile(m, (N, 1))
    a = jnp.tanh(jnp.concatenate([e, m_rep], axis=1) @ params["wa0"] + params["ba0"])
    a = jnp.tanh(a @ params["wa1"] + params["ba1"])
    logits = (a @ params["wa2"] + params["ba2"]).reshape(B, -1)
    w = jax.nn.softmax(logits, axis=1).reshape(-1, 1)
    return jnp.sum((w * v).reshape(B, -1, H), axis=1)


if __name__ == "__main__":
    SELF_OBS_DIM = 18
    NEIGHBOR_OBS_DIM = 6
    NEIGHBOR_HIDDEN = 32
    NUM_NEIGHBORS = 6
    BATCH = 32                                # -> grid of 4 row-blocks of 48 rows
    OBS_DIM = SELF_OBS_DIM + NEIGHBOR_OBS_DIM * NUM_NEIGHBORS + 4  # extras ignored

    key = jax.random.PRNGKey(0)
    k_params, k_self, k_obs = jax.random.split(key, 3)
    params = make_params(k_params, SELF_OBS_DIM, NEIGHBOR_OBS_DIM, NEIGHBOR_HIDDEN)
    self_obs = jax.random.normal(k_self, (BATCH, SELF_OBS_DIM), jnp.float32)
    obs = jax.random.normal(k_obs, (BATCH, OBS_DIM), jnp.float32)

    packed = pack_params(params, self_obs_dim=SELF_OBS_DIM,
                         neighbor_obs_dim=NEIGHBOR_OBS_DIM,
                         neighbor_hidden_size=NEIGHBOR_HIDDEN,
                         dtype=jnp.float32)   # use jnp.bfloat16 on v6e/v7x at scale

    out = quad_neighborhood_encoder_attention(
        self_obs, obs, packed,
        num_use_neighbor_obs=NUM_NEIGHBORS, block_groups=8)
    out = jax.block_until_ready(out)

    ref = reference_forward(
        self_obs, obs, params,
        self_obs_dim=SELF_OBS_DIM, neighbor_obs_dim=NEIGHBOR_OBS_DIM,
        neighbor_hidden_size=NEIGHBOR_HIDDEN, num_use_neighbor_obs=NUM_NEIGHBORS)
    ref = jax.block_until_ready(ref)

    assert out.shape == (BATCH, NEIGHBOR_HIDDEN) and out.dtype == jnp.float32
    err = float(jnp.max(jnp.abs(out - ref)))
    assert jnp.allclose(out, ref, rtol=2e-3, atol=2e-3), f"mismatch: max abs err {err}"
    print("KERNEL_OK")
</pallas_src>

<mosaic_0001>
module attributes {stable_mosaic.version = 11 : i64} {
  func.func @_embed_kernel(%arg0: i32, %arg1: memref<4xi32, #tpu.memory_space<smem>>, %arg2: memref<48x6xf32, #tpu.memory_space<vmem>>, %arg3: memref<32x18xf32, #tpu.memory_space<vmem>>, %arg4: memref<72x32xf32, #tpu.memory_space<vmem>>, %arg5: memref<48x32xf32, #tpu.memory_space<vmem>>, %arg6: memref<8x32xf32, #tpu.memory_space<vmem>>) attributes {dimension_semantics = [#tpu.dimension_semantics<parallel>], iteration_bounds = array<i64: 4>, scalar_prefetch = 1 : i64, scratch_operands = 0 : i64, tpu.core_type = #tpu.core_type<tc>, window_params = [{transform_indices = @transform_0, window_bounds = array<i64: 48, 6>}, {pipeline_mode = #tpu.pipeline_mode<synchronous>, transform_indices = @transform_1, window_bounds = array<i64: 32, 18>}, {pipeline_mode = #tpu.pipeline_mode<synchronous>, transform_indices = @transform_2, window_bounds = array<i64: 72, 32>}, {transform_indices = @transform_3, window_bounds = array<i64: 48, 32>}, {transform_indices = @transform_4, window_bounds = array<i64: 8, 32>}]} {
    %0 = arith.index_cast %arg0 : i32 to index
    %1 = memref.load %arg1[%0] : memref<4xi32, #tpu.memory_space<smem>>
    %c0 = arith.constant 0 : index
    %c0_0 = arith.constant 0 : index
    %2 = vector.load %arg4[%c0, %c0_0] : memref<72x32xf32, #tpu.memory_space<vmem>>, vector<6x32xf32>
    %c8 = arith.constant 8 : index
    %c0_1 = arith.constant 0 : index
    %3 = vector.load %arg4[%c8, %c0_1] : memref<72x32xf32, #tpu.memory_space<vmem>>, vector<18x32xf32>
    %c32 = arith.constant 32 : index
    %c0_2 = arith.constant 0 : index
    %4 = vector.load %arg4[%c32, %c0_2] : memref<72x32xf32, #tpu.memory_space<vmem>>, vector<32x32xf32>
    %c64 = arith.constant 64 : index
    %c0_3 = arith.constant 0 : index
    %5 = vector.load %arg4[%c64, %c0_3] : memref<72x32xf32, #tpu.memory_space<vmem>>, vector<8x32xf32>
    %6 = vector.extract_strided_slice %5 {offsets = [0, 0], sizes = [1, 32], strides = [1, 1]} : vector<8x32xf32> to vector<1x32xf32>
    %7 = vector.extract_strided_slice %5 {offsets = [1, 0], sizes = [1, 32], strides = [1, 1]} : vector<8x32xf32> to vector<1x32xf32>
    %8 = tpu.iota {dimensions = array<i32: 0>} : vector<48x32xi32>
    %9 = tpu.iota {dimensions = array<i32: 1>} : vector<48x32xi32>
    %10 = arith.subi %8, %9 : vector<48x32xi32>
    %11 = vector.broadcast %1 : i32 to vector<48x32xi32>
    %12 = arith.addi %10, %11 : vector<48x32xi32>
    %c0_i32 = arith.constant 0 : i32
    %13 = vector.broadcast %c0_i32 : i32 to vector<48x32xi32>
    %14 = arith.cmpi eq, %12, %13 : vector<48x32xi32>
    %c32_i32 = arith.constant 32 : i32
    %15 = vector.broadcast %c32_i32 : i32 to vector<48x32xi32>
    %16 = arith.cmpi eq, %12, %15 : vector<48x32xi32>
    %17 = arith.ori %14, %16 : vector<48x32xi1>
    %c64_i32 = arith.constant 64 : i32
    %18 = vector.broadcast %c64_i32 : i32 to vector<48x32xi32>
    %19 = arith.cmpi eq, %12, %18 : vector<48x32xi32>
    %20 = arith.ori %17, %19 : vector<48x32xi1>
    %cst = arith.constant 1.000000e+00 : f32
    %cst_4 = arith.constant 0.000000e+00 : f32
    %21 = vector.broadcast %cst : f32 to vector<48x32xf32>
    %22 = vector.broadcast %cst_4 : f32 to vector<48x32xf32>
    %23 = arith.select %20, %21, %22 : vector<48x32xi1>, vector<48x32xf32>
    %c0_5 = arith.constant 0 : index
    %c0_6 = arith.constant 0 : index
    %24 = vector.load %arg3[%c0_5, %c0_6] : memref<32x18xf32, #tpu.memory_space<vmem>>, vector<32x18xf32>
    %cst_7 = arith.constant dense<0.000000e+00> : vector<32x32xf32>
    %25 = tpu.matmul %24, %3, %cst_7 {dimension_numbers = #tpu.dot_dimension_numbers<[1], [0], [0], [1], [0, 0, 1, 1], [], []>} : vector<32x18xf32>, vector<18x32xf32>, vector<32x32xf32> -> vector<32x32xf32>
    %cst_8 = arith.constant dense<0.000000e+00> : vector<48x32xf32>
    %26 = tpu.matmul %23, %25, %cst_8 {dimension_numbers = #tpu.dot_dimension_numbers<[1], [0], [0], [1], [0, 0, 1, 1], [], []>} : vector<48x32xf32>, vector<32x32xf32>, vector<48x32xf32> -> vector<48x32xf32>
    %c0_9 = arith.constant 0 : index
    %c0_10 = arith.constant 0 : index
    %27 = vector.load %arg2[%c0_9, %c0_10] : memref<48x6xf32, #tpu.memory_space<vmem>>, vector<48x6xf32>
    %cst_11 = arith.constant dense<0.000000e+00> : vector<48x32xf32>
    %28 = tpu.matmul %27, %2, %cst_11 {dimension_numbers = #tpu.dot_dimension_numbers<[1], [0], [0], [1], [0, 0, 1, 1], [], []>} : vector<48x6xf32>, vector<6x32xf32>, vector<48x32xf32> -> vector<48x32xf32>
    %29 = arith.addf %28, %26 : vector<48x32xf32>
    %30 = vector.broadcast %6 : vector<1x32xf32> to vector<48x32xf32>
    %31 = arith.addf %29, %30 : vector<48x32xf32>
    %32 = math.tanh %31 : vector<48x32xf32>
    %cst_12 = arith.constant dense<0.000000e+00> : vector<48x32xf32>
    %33 = tpu.matmul %32, %4, %cst_12 {dimension_numbers = #tpu.dot_dimension_numbers<[1], [0], [0], [1], [0, 0, 1, 1], [], []>} : vector<48x32xf32>, vector<32x32xf32>, vector<48x32xf32> -> vector<48x32xf32>
    %34 = vector.broadcast %7 : vector<1x32xf32> to vector<48x32xf32>
    %35 = arith.addf %33, %34 : vector<48x32xf32>
    %36 = math.tanh %35 : vector<48x32xf32>
    %37 = tpu.iota {dimensions = array<i32: 0>} : vector<8x48xi32>
    %38 = tpu.iota {dimensions = array<i32: 1>} : vector<8x48xi32>
    %c6_i32 = arith.constant 6 : i32
    %39 = vector.broadcast %c6_i32 : i32 to vector<8x48xi32>
    %40 = arith.muli %37, %39 : vector<8x48xi32>
    %41 = arith.cmpi sge, %38, %40 : vector<8x48xi32>
    %c6_i32_13 = arith.constant 6 : i32
    %42 = vector.broadcast %c6_i32_13 : i32 to vector<8x48xi32>
    %43 = arith.muli %37, %42 : vector<8x48xi32>
    %c6_i32_14 = arith.constant 6 : i32
    %44 = vector.broadcast %c6_i32_14 : i32 to vector<8x48xi32>
    %45 = arith.addi %43, %44 : vector<8x48xi32>
    %46 = arith.cmpi slt, %38, %45 : vector<8x48xi32>
    %47 = arith.andi %41, %46 : vector<8x48xi1>
    %cst_15 = arith.constant 0.166666672 : f32
    %cst_16 = arith.constant 0.000000e+00 : f32
    %48 = vector.broadcast %cst_15 : f32 to vector<8x48xf32>
    %49 = vector.broadcast %cst_16 : f32 to vector<8x48xf32>
    %50 = arith.select %47, %48, %49 : vector<8x48xi1>, vector<8x48xf32>
    %c0_17 = arith.constant 0 : index
    %c0_18 = arith.constant 0 : index
    %51 = vector.load %arg5[%c0_17, %c0_18] : memref<48x32xf32, #tpu.memory_space<vmem>>, vector<48x32xf32>
    tpu.vector_store %arg5[%c0_17, %c0_18], %36 {strides = array<i32>} : memref<48x32xf32, #tpu.memory_space<vmem>>, vector<48x32xf32>,
    %cst_19 = arith.constant dense<0.000000e+00> : vector<8x32xf32>
    %52 = tpu.matmul %50, %36, %cst_19 {dimension_numbers = #tpu.dot_dimension_numbers<[1], [0], [0], [1], [0, 0, 1, 1], [], []>} : vector<8x48xf32>, vector<48x32xf32>, vector<8x32xf32> -> vector<8x32xf32>
    %c0_20 = arith.constant 0 : index
    %c0_21 = arith.constant 0 : index
    %53 = vector.load %arg6[%c0_20, %c0_21] : memref<8x32xf32, #tpu.memory_space<vmem>>, vector<8x32xf32>
    tpu.vector_store %arg6[%c0_20, %c0_21], %52 {strides = array<i32>} : memref<8x32xf32, #tpu.memory_space<vmem>>, vector<8x32xf32>,
    return
  }
  func.func @transform_0(%arg0: i32, %arg1: memref<4xi32, #tpu.memory_space<smem>>) -> (i32, i32) {
    %c0_i32 = arith.constant 0 : i32
    %c0_i32_0 = arith.constant 0 : i32
    return %arg0, %c0_i32 : i32, i32
  }
  func.func @transform_1(%arg0: i32, %arg1: memref<4xi32, #tpu.memory_space<smem>>) -> (i32, i32) {
    %c0_i32 = arith.constant 0 : i32
    %c0_i32_0 = arith.constant 0 : i32
    %c0_i32_1 = arith.constant 0 : i32
    return %c0_i32, %c0_i32_0 : i32, i32
  }
  func.func @transform_2(%arg0: i32, %arg1: memref<4xi32, #tpu.memory_space<smem>>) -> (i32, i32) {
    %c0_i32 = arith.constant 0 : i32
    %c0_i32_0 = arith.constant 0 : i32
    %c0_i32_1 = arith.constant 0 : i32
    return %c0_i32, %c0_i32_0 : i32, i32
  }
  func.func @transform_3(%arg0: i32, %arg1: memref<4xi32, #tpu.memory_space<smem>>) -> (i32, i32) {
    %c0_i32 = arith.constant 0 : i32
    %c0_i32_0 = arith.constant 0 : i32
    return %arg0, %c0_i32 : i32, i32
  }
  func.func @transform_4(%arg0: i32, %arg1: memref<4xi32, #tpu.memory_space<smem>>) -> (i32, i32) {
    %c0_i32 = arith.constant 0 : i32
    %c0_i32_0 = arith.constant 0 : i32
    return %arg0, %c0_i32 : i32, i32
  }
}

</mosaic_0001>

<llo_original>
// kernel: tpu_custom_call.1
$region0: #{tpu_custom_call.1}
  #allocation0 [shape = 'u32[]', space=smem, size = 0x4, offset = 0x4, fixed_abs, tag = 'smem constant byte address 0x4 - core index']
  #allocation1 [shape = 'u32[144,128]{1,0:T(1,128)}', space=vmem, size = 0x12000, scoped, tag = 'internal scratch']
  #allocation2 [shape = 's32[1]{0}', space=sflag, size = 0x4, scoped, tag = 'scoped memory for tpu_custom_call.1']
  #allocation3 [shape = 'u8[512]{0}', space=smem, size = 0x200, scoped, tag = 'prefetched SMEM operand 0']
  %s0 = inlined_call_operand.vmem [shape: s32[4], index: 0, kind: input, shape index: {}]
  %s1 = inlined_call_operand.vmem [shape: f32[192,6], index: 1, kind: input, shape index: {}]
  %s2 = inlined_call_operand.vmem [shape: f32[32,18], index: 2, kind: input, shape index: {}]
  %s3 = inlined_call_operand.vmem [shape: f32[72,32], index: 3, kind: input, shape index: {}]
  %s4 = inlined_call_operand.vmem [shape: f32[192,32], index: 4, kind: output, shape index: {0}]
  %s5 = inlined_call_operand.hbm [shape: f32[32,32], index: 5, kind: output, shape index: {1}]
  %6 = xla_tuple %s4, %s5
  %s7 = sld [smem:[#allocation0]]
  $region53: #{tpu_custom_call.1} parent=0
    _
  %s9 = ssub.s32 1, %s7
  %s10 = scalar_select 0, %s9, %s7
  %s11 = sshll.u32 %s0, 4
  %s12 = int_to_ptr.vmem [resolvable:$true] %s11
  %14 = dma.vmem_to_smem %s12, 16, [#allocation3], [#allocation2]
  %15 = dma.done [#allocation2], 16
  %16 = sfence
  $region1: #{tpu_custom_call.1} parent=0
    #allocation4 [shape = 'u8[8192]{0}', space=vmem, size = 0x2000, scoped, tag = 'output window, operand 1']
    #allocation5 [shape = 's32[2]{0}', space=sflag, size = 0x8, scoped, tag = 'scoped memory for tpu_custom_call.1']
    %17 = vsyncpa [#allocation5], 0
    %s18 = scalar_lea.sflag [#allocation5], 1
    %19 = vsyncpa %s18, 0
    loop: start=0, step=1, limit=6
    $region2: #{tpu_custom_call.1} parent=1 // loop_pre_header
      _
    $region3: #{tpu_custom_call.1} parent=1 // loop_header
      %s21 = sphi 0, %s25
      %p22 = scmp.ge.s32.totalorder %s21, 6
      %s31 = sphi 0, %s33
      %s34 = sphi 0, %s31
      %s35 = sphi 0, %s34
      %s51 = sphi 0, %s35
      %s55 = sphi 0, %s55
      %s57 = sphi 0, %s55
      %s58 = sphi 0, %s57
      %s72 = sphi 0, %s58
      %s76 = sphi 0, %s76
      %s78 = sphi 0, %s76
      %s79 = sphi 0, %s78
      %s93 = sphi 0, %s79
      %s99 = sphi 0, %s101
      %s102 = sphi 0, %s99
      %s103 = sphi 0, %s102
      %s119 = sphi 0, %s103
      %s125 = sphi 0, %s127
      %s128 = sphi 0, %s125
      %s129 = sphi 0, %s128
      %s145 = sphi 0, %s129
    $region4: #{tpu_custom_call.1} parent=1 // loop_header_branch
      %24 = sbr.rel (%p22) target = $region8
    $region5: #{tpu_custom_call.1} parent=1 // loop_body
      %s26 = ssub.s32 %s21, 1
      %s27 = ssub.s32 %s21, 2
      %s28 = sadd.s32 %s21, 1
      %s29 = ssub.s32 %s21, %s28
      %p30 = scmp.eq.s32.totalorder %s29, 0
      %s32 = sadd.s32 %s31, 1
      %s33 = scalar_select %p30, %s31, %s32
      %p36 = pneg %p30
      %p37 = scmp.eq.s32.totalorder %s21, 3
      %p38 = por %p36, %p37
      %p39 = scmp.ne.s32.totalorder %s31, %s34
      %p40 = scmp.eq.s32.totalorder %s21, 0
      %p41 = por %p39, %p40
      %p42 = scmp.ne.s32.totalorder %s31, %s34
      %p43 = scmp.eq.s32.totalorder %s26, 3
      %p44 = por %p42, %p43
      %p45 = scmp.ne.s32.totalorder %s34, %s35
      %p46 = scmp.eq.s32.totalorder %s26, 0
      %p47 = por %p45, %p46
      %p48 = scmp.ne.s32.totalorder %s34, %s35
      %p49 = scmp.eq.s32.totalorder %s27, 3
      %p50 = por %p48, %p49
      %p52 = scmp.ne.s32.totalorder %s35, %s51
      %p53 = scmp.eq.s32.totalorder %s27, 0
      %p54 = por %p52, %p53
      %s56 = sadd.s32 %s55, 1
      %p59 = scmp.eq.s32.totalorder %s21, 3
      %p60 = scmp.ne.s32.totalorder %s55, %s57
      %p61 = scmp.eq.s32.totalorder %s21, 0
      %p62 = por %p60, %p61
      %p63 = scmp.ne.s32.totalorder %s55, %s57
      %p64 = scmp.eq.s32.totalorder %s26, 3
      %p65 = por %p63, %p64
      %p66 = scmp.ne.s32.totalorder %s57, %s58
      %p67 = scmp.eq.s32.totalorder %s26, 0
      %p68 = por %p66, %p67
      %p69 = scmp.ne.s32.totalorder %s57, %s58
      %p70 = scmp.eq.s32.totalorder %s27, 3
      %p71 = por %p69, %p70
      %p73 = scmp.ne.s32.totalorder %s58, %s72
      %p74 = scmp.eq.s32.totalorder %s27, 0
      %p75 = por %p73, %p74
      %s77 = sadd.s32 %s76, 1
      %p80 = scmp.eq.s32.totalorder %s21, 3
      %p81 = scmp.ne.s32.totalorder %s76, %s78
      %p82 = scmp.eq.s32.totalorder %s21, 0
      %p83 = por %p81, %p82
      %p84 = scmp.ne.s32.totalorder %s76, %s78
      %p85 = scmp.eq.s32.totalorder %s26, 3
      %p86 = por %p84, %p85
      %p87 = scmp.ne.s32.totalorder %s78, %s79
      %p88 = scmp.eq.s32.totalorder %s26, 0
      %p89 = por %p87, %p88
      %p90 = scmp.ne.s32.totalorder %s78, %s79
      %p91 = scmp.eq.s32.totalorder %s27, 3
      %p92 = por %p90, %p91
      %p94 = scmp.ne.s32.totalorder %s79, %s93
      %p95 = scmp.eq.s32.totalorder %s27, 0
      %p96 = por %p94, %p95
      %s97 = ssub.s32 %s21, %s28
      %p98 = scmp.eq.s32.totalorder %s97, 0
      %s100 = sadd.s32 %s99, 1
      %s101 = scalar_select %p98, %s99, %s100
      %p104 = pneg %p98
      %p105 = scmp.eq.s32.totalorder %s21, 3
      %p106 = por %p104, %p105
      %p107 = scmp.ne.s32.totalorder %s99, %s102
      %p108 = scmp.eq.s32.totalorder %s21, 0
      %p109 = por %p107, %p108
      %p110 = scmp.ne.s32.totalorder %s99, %s102
      %p111 = scmp.eq.s32.totalorder %s26, 3
      %p112 = por %p110, %p111
      %p113 = scmp.ne.s32.totalorder %s102, %s103
      %p114 = scmp.eq.s32.totalorder %s26, 0
      %p115 = por %p113, %p114
      %p116 = scmp.ne.s32.totalorder %s102, %s103
      %p117 = scmp.eq.s32.totalorder %s27, 3
      %p118 = por %p116, %p117
      %p120 = scmp.ne.s32.totalorder %s103, %s119
      %p121 = scmp.eq.s32.totalorder %s27, 0
      %p122 = por %p120, %p121
      %s123 = ssub.s32 %s21, %s28
      %p124 = scmp.eq.s32.totalorder %s123, 0
      %s126 = sadd.s32 %s125, 1
      %s127 = scalar_select %p124, %s125, %s126
      %p130 = pneg %p124
      %p131 = scmp.eq.s32.totalorder %s21, 3
      %p132 = por %p130, %p131
      %p133 = scmp.ne.s32.totalorder %s125, %s128
      %p134 = scmp.eq.s32.totalorder %s21, 0
      %p135 = por %p133, %p134
      %p136 = scmp.ne.s32.totalorder %s125, %s128
      %p137 = scmp.eq.s32.totalorder %s26, 3
      %p138 = por %p136, %p137
      %p139 = scmp.ne.s32.totalorder %s128, %s129
      %p140 = scmp.eq.s32.totalorder %s26, 0
      %p141 = por %p139, %p140
      %p142 = scmp.ne.s32.totalorder %s128, %s129
      %p143 = scmp.eq.s32.totalorder %s27, 3
      %p144 = por %p142, %p143
      %p146 = scmp.ne.s32.totalorder %s129, %s145
      %p147 = scmp.eq.s32.totalorder %s27, 0
      %p148 = por %p146, %p147
      %p149 = scmp.le.s32.totalorder 1, %s21
      %p150 = scmp.lt.s32.totalorder %s21, 5
      %p151 = pnand %p149, %p150
      %p152 = pneg %p151
      // Predicated region
      $region9: #{tpu_custom_call.1} parent=5 // pred_check
        _
      $region10: #{tpu_custom_call.1} parent=5 // pred_check_branch
        %154 = sbr.rel (%p151) target = $region12
      $region11: #{tpu_custom_call.1} parent=5 // pred_region
        %s155 = ssub.s32 %s21, 1
        // Predicated region
        $region13: #{tpu_custom_call.1} parent=11 // pred_check
          %p156 = pneg %p68
        $region14: #{tpu_custom_call.1} parent=11 // pred_check_branch
          %158 = sbr.rel (%p156) target = $region16
        $region15: #{tpu_custom_call.1} parent=11 // pred_region
          _
        $region16: #{tpu_custom_call.1} parent=11 // pred_fallthru
          _
        // Predicated region
        $region17: #{tpu_custom_call.1} parent=11 // pred_check
          %p159 = pneg %p89
        $region18: #{tpu_custom_call.1} parent=11 // pred_check_branch
          %161 = sbr.rel (%p159) target = $region20
        $region19: #{tpu_custom_call.1} parent=11 // pred_region
          _
        $region20: #{tpu_custom_call.1} parent=11 // pred_fallthru
          _
      $region12: #{tpu_custom_call.1} parent=5 // pred_fallthru
        _
      %p162 = scmp.lt.s32.totalorder %s21, 4
      // Predicated region
      $region21: #{tpu_custom_call.1} parent=5 // pred_check
        %p163 = pneg %p162
      $region22: #{tpu_custom_call.1} parent=5 // pred_check_branch
        %165 = sbr.rel (%p163) target = $region24
      $region23: #{tpu_custom_call.1} parent=5 // pred_region
        // Predicated region
        $region25: #{tpu_custom_call.1} parent=23 // pred_check
          %p166 = pneg %p41
        $region26: #{tpu_custom_call.1} parent=23 // pred_check_branch
          %168 = sbr.rel (%p166) target = $region28
        $region27: #{tpu_custom_call.1} parent=23 // pred_region
          %s169 = smul.u32 6, %s21
          %p170 = scmp.lt.s32.totalorder %s169, 23
          %s171 = scalar_select %p170, %s169, 23
          %s172 = smul.addr %s171, 8
          %s173 = scalar_lea.vmem %s1, %s172
          %s174 = smul.u32 6, %s21
        $region28: #{tpu_custom_call.1} parent=23 // pred_fallthru
          _
      $region24: #{tpu_custom_call.1} parent=5 // pred_fallthru
        _
      %p175 = scmp.le.s32.totalorder 1, %s21
      %p176 = scmp.lt.s32.totalorder %s21, 5
      %p177 = pnand %p175, %p176
      %p178 = pneg %p177
      // Predicated region
      $region29: #{tpu_custom_call.1} parent=5 // pred_check
        _
      $region30: #{tpu_custom_call.1} parent=5 // pred_check_branch
        %180 = sbr.rel (%p177) target = $region32
      $region31: #{tpu_custom_call.1} parent=5 // pred_region
        %s181 = ssub.s32 %s21, 1
        %s182 = smul.u32 6, %s26
        %p183 = scmp.lt.s32.totalorder %s182, 23
        %s184 = scalar_select %p183, %s182, 23
        %s185 = smul.addr %s184, 8
        %s186 = scalar_lea.vmem %s1, %s185
        %p187 = pneg %p47
        %p188 = pneg %p44
        %p189 = pneg %p68
        %p190 = pneg %p65
        %p191 = pneg %p89
        %p192 = pneg %p86
        %p193 = pneg %p115
        %p194 = pneg %p112
        %s195 = smul.u32 6, %s26
        %p196 = scmp.lt.s32.totalorder %s195, 23
        %s197 = scalar_select %p196, %s195, 23
        %s198 = smul.addr %s197, 8
        %s199 = scalar_lea.vmem %s4, %s198
        %p200 = pneg %p141
        %p201 = pneg %p138
        %s202 = sand.u32 %s128, 1
        %s203 = scalar_lea.sflag [#allocation5], %s202
        %s204 = sand.u32 %s128, 1
        %s205 = smul.addr %s204, 8
        %s206 = scalar_lea.vmem [#allocation4], %s205
        %s207 = smul.u32 6, %s26
        %p208 = scmp.lt.s32.totalorder %s207, 23
        %s209 = scalar_select %p208, %s207, 23
        %s210 = smul.addr %s209, 8
        %s211 = scalar_lea.vmem %s1, %s210
        %s212 = smul.u32 6, %s26
        %s213 = smul.u32 6, %s26
        %p214 = scmp.lt.s32.totalorder %s213, 23
        %s215 = scalar_select %p214, %s213, 23
        %s216 = smul.addr %s215, 8
        %s217 = scalar_lea.vmem %s4, %s216
        %s218 = smul.u32 6, %s26
        %s219 = sld [smem:[#allocation3 + %s26]]
        %v220 = vld [vmem:[%s3] sm:$0x3f]
        %v221 = vld [vmem:[%s3 + $0x8] sm:$0xff]
        %v222 = vld [vmem:[%s3 + $0x10] sm:$0xff]
        %v223 = vld [vmem:[%s3 + $0x18] sm:$0x3]
        %v224 = vld [vmem:[%s3 + $0x20] sm:$0xff]
        %v225 = vld [vmem:[%s3 + $0x28] sm:$0xff]
        %v226 = vld [vmem:[%s3 + $0x30] sm:$0xff]
        %v227 = vld [vmem:[%s3 + $0x38] sm:$0xff]
        %v228 = vld [vmem:[%s3 + $0x40] sm:$0xff]
        %v229 = vlaneseq
        %v230 = vshrl.u32 %v229, 7
        %v231 = vadd.s32 %v230, 8
        %v232 = vadd.s32 %v230, 16
        %v233 = vadd.s32 %v230, 24
        %v234 = vadd.s32 %v230, 32
        %v235 = vadd.s32 %v230, 40
        %v236 = vlaneseq
        %v237 = vand.u32 %v236, 127
        %v238 = vsub.s32 %v230, %v237
        %v239 = vsub.s32 %v231, %v237
        %v240 = vsub.s32 %v232, %v237
        %v241 = vsub.s32 %v233, %v237
        %v242 = vsub.s32 %v234, %v237
        %v243 = vsub.s32 %v235, %v237
        %v244 = vstv %s219
        %v245 = vadd.s32 %v238, %v244
        %v246 = vadd.s32 %v239, %v244
        %v247 = vadd.s32 %v240, %v244
        %v248 = vadd.s32 %v241, %v244
        %v249 = vadd.s32 %v242, %v244
        %v250 = vadd.s32 %v243, %v244
        %vm251 = vcmp.eq.s32.totalorder %v245, 0
        %vm252 = vcmp.eq.s32.totalorder %v246, 0
        %vm253 = vcmp.eq.s32.totalorder %v247, 0
        %vm254 = vcmp.eq.s32.totalorder %v248, 0
        %vm255 = vcmp.eq.s32.totalorder %v249, 0
        %vm256 = vcmp.eq.s32.totalorder %v250, 0
        %vm257 = vcmp.eq.s32.totalorder %v245, 32
        %vm258 = vcmp.eq.s32.totalorder %v246, 32
        %vm259 = vcmp.eq.s32.totalorder %v247, 32
        %vm260 = vcmp.eq.s32.totalorder %v248, 32
        %vm261 = vcmp.eq.s32.totalorder %v249, 32
        %vm262 = vcmp.eq.s32.totalorder %v250, 32
        %vm263 = vmor %vm251, %vm257
        %vm264 = vmor %vm252, %vm258
        %vm265 = vmor %vm253, %vm259
        %vm266 = vmor %vm254, %vm260
        %vm267 = vmor %vm255, %vm261
        %vm268 = vmor %vm256, %vm262
        %vm269 = vcmp.eq.s32.totalorder %v245, 64
        %vm270 = vcmp.eq.s32.totalorder %v246, 64
        %vm271 = vcmp.eq.s32.totalorder %v247, 64
        %vm272 = vcmp.eq.s32.totalorder %v248, 64
        %vm273 = vcmp.eq.s32.totalorder %v249, 64
        %vm274 = vcmp.eq.s32.totalorder %v250, 64
        %vm275 = vmor %vm263, %vm269
        %vm276 = vmor %vm264, %vm270
        %vm277 = vmor %vm265, %vm271
        %vm278 = vmor %vm266, %vm272
        %vm279 = vmor %vm267, %vm273
        %vm280 = vmor %vm268, %vm274
        %v281 = vsel %vm275, 1.0, 0.0
        %v282 = vsel %vm276, 1.0, 0.0
        %v283 = vsel %vm277, 1.0, 0.0
        %v284 = vsel %vm278, 1.0, 0.0
        %v285 = vsel %vm279, 1.0, 0.0
        %v286 = vsel %vm280, 1.0, 0.0
        %v287 = vld [vmem:[%s2] sm:$0xff]
        %v288 = vld [vmem:[%s2 + $0x8] sm:$0xff]
        %v289 = vld [vmem:[%s2 + $0x10] sm:$0xff]
        %v290 = vld [vmem:[%s2 + $0x18] sm:$0xff]
        %vm291 = vcmask 146432
        %v293 = vsel %vm291, %v287, 0
        %v296 = vsel %vm291, %v288, 0
        %v299 = vsel %vm291, %v289, 0
        %v302 = vsel %vm291, %v290, 0
        %vm304 = vcmask 1041408
        %v306 = vsel %vm304, %v223, 0
        %308 = vmatprep.subr.mxu0 0.0
        %309 = vmatpush1.msra.mxu0 0.0
        %310 = vmatprep.subr.mxu0 0.0
        %311 = vmatpush1.msra.mxu0 0.0
        %312 = vmatprep.subr.mxu0 0.0
        %313 = vmatpush1.msra.mxu0 0.0
        %314 = vmatprep.subr.mxu0 0.0
        %315 = vmatpush1.msra.mxu0 0.0
        %316 = vmatprep.subr.mxu0 0.0
        %317 = vmatpush1.msra.mxu0 0.0
        %318 = vmatprep.subr.mxu0 0.0
        %319 = vmatpush1.msra.mxu0 0.0
        %320 = vmatprep.subr.mxu0 0.0
        %321 = vmatpush1.msra.mxu0 0.0
        %322 = vmatprep.subr.mxu0 0.0
        %323 = vmatpush1.msra.mxu0 0.0
        %324 = vmatprep.subr.mxu0 0.0
        %325 = vmatpush1.msra.mxu0 0.0
        %326 = vmatprep.subr.mxu0 0.0
        %327 = vmatpush1.msra.mxu0 0.0
        %328 = vmatprep.subr.mxu0 0.0
        %329 = vmatpush1.msra.mxu0 0.0
        %330 = vmatprep.subr.mxu0 0.0
        %331 = vmatpush1.msra.mxu0 0.0
        %332 = vmatprep.subr.mxu0 0.0
        %333 = vmatpush1.msra.mxu0 0.0
        %334 = vmatprep.subr.mxu0 0.0
        %335 = vmatpush1.msra.mxu0 %v306
        %336 = vmatprep.subr.mxu0 0.0
        %337 = vmatpush1.msra.mxu0 %v222
        %338 = vmatprep.subr.mxu0 0.0
        %339 = vmatpush1.msra.mxu0 %v221
        %340 = vmatprep.subr.mxu0 0.0
        %341 = vmatpush2.msra.mxu0 0.0
        %342 = vmatprep.subr.mxu0 0.0
        %343 = vmatpush2.msra.mxu0 0.0
        %344 = vmatprep.subr.mxu0 0.0
        %345 = vmatpush2.msra.mxu0 0.0
        %346 = vmatprep.subr.mxu0 0.0
        %347 = vmatpush2.msra.mxu0 0.0
        %348 = vmatprep.subr.mxu0 0.0
        %349 = vmatpush2.msra.mxu0 0.0
        %350 = vmatprep.subr.mxu0 0.0
        %351 = vmatpush2.msra.mxu0 0.0
        %352 = vmatprep.subr.mxu0 0.0
        %353 = vmatpush2.msra.mxu0 0.0
        %354 = vmatprep.subr.mxu0 0.0
        %355 = vmatpush2.msra.mxu0 0.0
        %356 = vmatprep.subr.mxu0 0.0
        %357 = vmatpush2.msra.mxu0 0.0
        %358 = vmatprep.subr.mxu0 0.0
        %359 = vmatpush2.msra.mxu0 0.0
        %360 = vmatprep.subr.mxu0 0.0
        %361 = vmatpush2.msra.mxu0 0.0
        %362 = vmatprep.subr.mxu0 0.0
        %363 = vmatpush2.msra.mxu0 0.0
        %364 = vmatprep.subr.mxu0 0.0
        %365 = vmatpush2.msra.mxu0 0.0
        %366 = vmatprep.subr.mxu0 0.0
        %367 = vmatpush2.msra.mxu0 0.0
        %368 = vmatprep.subr.mxu0 0.0
        %369 = vmatpush2.msra.mxu0 0.0
        %370 = vmatprep.subr.mxu0 0.0
        %371 = vmatpush2.msra.mxu0 0.0
        %372 = vmatprep.mubr.f32.mxu0 0.0
        %373 = vmatmul.mubr.f32.gmra.mxu0 %v293
        %v374 = vpop.f32.mrf.mxu0
        %v375 = vadd.f32 0.0, %v374
        %v376 = vpop.f32.mrf.mxu0
        %377 = vmatprep.mubr.f32.mxu0 0.0
        %378 = vmatmul.mubr.f32.gmra.mxu0 %v296
        %v379 = vpop.f32.mrf.mxu0
        %v380 = vadd.f32 0.0, %v379
        %v381 = vpop.f32.mrf.mxu0
        %382 = vmatprep.mubr.f32.mxu0 0.0
        %383 = vmatmul.mubr.f32.gmra.mxu0 %v299
        %v384 = vpop.f32.mrf.mxu0
        %v385 = vadd.f32 0.0, %v384
        %v386 = vpop.f32.mrf.mxu0
        %387 = vmatprep.mubr.f32.mxu0 0.0
        %388 = vmatmul.mubr.f32.gmra.mxu0 %v302
        %v389 = vpop.f32.mrf.mxu0
        %v390 = vadd.f32 0.0, %v389
        %v391 = vpop.f32.mrf.mxu0
        %392 = vdwg.mxu0
        %vm393 = vcmask 261120
        %v395 = vsel %vm393, %v281, 0
        %v398 = vsel %vm393, %v282, 0
        %v401 = vsel %vm393, %v283, 0
        %v404 = vsel %vm393, %v284, 0
        %v407 = vsel %vm393, %v285, 0
        %v410 = vsel %vm393, %v286, 0
        %412 = vmatprep.subr.mxu0 0.0
        %413 = vmatpush1.msra.mxu0 0.0
        %414 = vmatprep.subr.mxu0 0.0
        %415 = vmatpush1.msra.mxu0 0.0
        %416 = vmatprep.subr.mxu0 0.0
        %417 = vmatpush1.msra.mxu0 0.0
        %418 = vmatprep.subr.mxu0 0.0
        %419 = vmatpush1.msra.mxu0 0.0
        %420 = vmatprep.subr.mxu0 0.0
        %421 = vmatpush1.msra.mxu0 0.0
        %422 = vmatprep.subr.mxu0 0.0
        %423 = vmatpush1.msra.mxu0 0.0
        %424 = vmatprep.subr.mxu0 0.0
        %425 = vmatpush1.msra.mxu0 0.0
        %426 = vmatprep.subr.mxu0 0.0
        %427 = vmatpush1.msra.mxu0 0.0
        %428 = vmatprep.subr.mxu0 0.0
        %429 = vmatpush1.msra.mxu0 0.0
        %430 = vmatprep.subr.mxu0 0.0
        %431 = vmatpush1.msra.mxu0 0.0
        %432 = vmatprep.subr.mxu0 0.0
        %433 = vmatpush1.msra.mxu0 0.0
        %434 = vmatprep.subr.mxu0 0.0
        %435 = vmatpush1.msra.mxu0 0.0
        %436 = vmatprep.subr.mxu0 0.0
        %437 = vmatpush1.msra.mxu0 %v390
        %438 = vmatprep.subr.mxu0 0.0
        %439 = vmatpush1.msra.mxu0 %v385
        %440 = vmatprep.subr.mxu0 0.0
        %441 = vmatpush1.msra.mxu0 %v380
        %442 = vmatprep.subr.mxu0 0.0
        %443 = vmatpush1.msra.mxu0 %v375
        %444 = vmatprep.subr.mxu0 0.0
        %445 = vmatpush2.msra.mxu0 0.0
        %446 = vmatprep.subr.mxu0 0.0
        %447 = vmatpush2.msra.mxu0 0.0
        %448 = vmatprep.subr.mxu0 0.0
        %449 = vmatpush2.msra.mxu0 0.0
        %450 = vmatprep.subr.mxu0 0.0
        %451 = vmatpush2.msra.mxu0 0.0
        %452 = vmatprep.subr.mxu0 0.0
        %453 = vmatpush2.msra.mxu0 0.0
        %454 = vmatprep.subr.mxu0 0.0
        %455 = vmatpush2.msra.mxu0 0.0
        %456 = vmatprep.subr.mxu0 0.0
        %457 = vmatpush2.msra.mxu0 0.0
        %458 = vmatprep.subr.mxu0 0.0
        %459 = vmatpush2.msra.mxu0 0.0
        %460 = vmatprep.subr.mxu0 0.0
        %461 = vmatpush2.msra.mxu0 0.0
        %462 = vmatprep.subr.mxu0 0.0
        %463 = vmatpush2.msra.mxu0 0.0
        %464 = vmatprep.subr.mxu0 0.0
        %465 = vmatpush2.msra.mxu0 0.0
        %466 = vmatprep.subr.mxu0 0.0
        %467 = vmatpush2.msra.mxu0 0.0
        %468 = vmatprep.subr.mxu0 0.0
        %469 = vmatpush2.msra.mxu0 0.0
        %470 = vmatprep.subr.mxu0 0.0
        %471 = vmatpush2.msra.mxu0 0.0
        %472 = vmatprep.subr.mxu0 0.0
        %473 = vmatpush2.msra.mxu0 0.0
        %474 = vmatprep.subr.mxu0 0.0
        %475 = vmatpush2.msra.mxu0 0.0
        %476 = vmatprep.mubr.f32.mxu0 0.0
        %477 = vmatmul.mubr.f32.gmra.mxu0 %v395
        %v478 = vpop.f32.mrf.mxu0
        %v479 = vadd.f32 0.0, %v478
        %v480 = vpop.f32.mrf.mxu0
        %481 = vmatprep.mubr.f32.mxu0 0.0
        %482 = vmatmul.mubr.f32.gmra.mxu0 %v398
        %v483 = vpop.f32.mrf.mxu0
        %v484 = vadd.f32 0.0, %v483
        %v485 = vpop.f32.mrf.mxu0
        %486 = vmatprep.mubr.f32.mxu0 0.0
        %487 = vmatmul.mubr.f32.gmra.mxu0 %v401
        %v488 = vpop.f32.mrf.mxu0
        %v489 = vadd.f32 0.0, %v488
        %v490 = vpop.f32.mrf.mxu0
        %491 = vmatprep.mubr.f32.mxu0 0.0
        %492 = vmatmul.mubr.f32.gmra.mxu0 %v404
        %v493 = vpop.f32.mrf.mxu0
        %v494 = vadd.f32 0.0, %v493
        %v495 = vpop.f32.mrf.mxu0
        %496 = vmatprep.mubr.f32.mxu0 0.0
        %497 = vmatmul.mubr.f32.gmra.mxu0 %v407
        %v498 = vpop.f32.mrf.mxu0
        %v499 = vadd.f32 0.0, %v498
        %v500 = vpop.f32.mrf.mxu0
        %501 = vmatprep.mubr.f32.mxu0 0.0
        %502 = vmatmul.mubr.f32.gmra.mxu0 %v410
        %v503 = vpop.f32.mrf.mxu0
        %v504 = vadd.f32 0.0, %v503
        %v505 = vpop.f32.mrf.mxu0
        %506 = vdwg.mxu0
        %v507 = vld [vmem:[%s211] sm:$0xff]
        %v508 = vld [vmem:[%s211 + $0x8] sm:$0xff]
        %v509 = vld [vmem:[%s211 + $0x10] sm:$0xff]
        %v510 = vld [vmem:[%s211 + $0x18] sm:$0xff]
        %v511 = vld [vmem:[%s211 + $0x20] sm:$0xff]
        %v512 = vld [vmem:[%s211 + $0x28] sm:$0xff]
        %vm513 = vcmask 48128
        %v515 = vsel %vm513, %v507, 0
        %v518 = vsel %vm513, %v508, 0
        %v521 = vsel %vm513, %v509, 0
        %v524 = vsel %vm513, %v510, 0
        %v527 = vsel %vm513, %v511, 0
        %v530 = vsel %vm513, %v512, 0
        %vm532 = vcmask 1045504
        %v534 = vsel %vm532, %v220, 0
        %536 = vmatprep.subr.mxu0 0.0
        %537 = vmatpush1.msra.mxu0 0.0
        %538 = vmatprep.subr.mxu0 0.0
        %539 = vmatpush1.msra.mxu0 0.0
        %540 = vmatprep.subr.mxu0 0.0
        %541 = vmatpush1.msra.mxu0 0.0
        %542 = vmatprep.subr.mxu0 0.0
        %543 = vmatpush1.msra.mxu0 0.0
        %544 = vmatprep.subr.mxu0 0.0
        %545 = vmatpush1.msra.mxu0 0.0
        %546 = vmatprep.subr.mxu0 0.0
        %547 = vmatpush1.msra.mxu0 0.0
        %548 = vmatprep.subr.mxu0 0.0
        %549 = vmatpush1.msra.mxu0 0.0
        %550 = vmatprep.subr.mxu0 0.0
        %551 = vmatpush1.msra.mxu0 0.0
        %552 = vmatprep.subr.mxu0 0.0
        %553 = vmatpush1.msra.mxu0 0.0
        %554 = vmatprep.subr.mxu0 0.0
        %555 = vmatpush1.msra.mxu0 0.0
        %556 = vmatprep.subr.mxu0 0.0
        %557 = vmatpush1.msra.mxu0 0.0
        %558 = vmatprep.subr.mxu0 0.0
        %559 = vmatpush1.msra.mxu0 0.0
        %560 = vmatprep.subr.mxu0 0.0
        %561 = vmatpush1.msra.mxu0 0.0
        %562 = vmatprep.subr.mxu0 0.0
        %563 = vmatpush1.msra.mxu0 0.0
        %564 = vmatprep.subr.mxu0 0.0
        %565 = vmatpush1.msra.mxu0 0.0
        %566 = vmatprep.subr.mxu0 0.0
        %567 = vmatpush1.msra.mxu0 %v534
        %568 = vmatprep.subr.mxu0 0.0
        %569 = vmatpush2.msra.mxu0 0.0
        %570 = vmatprep.subr.mxu0 0.0
        %571 = vmatpush2.msra.mxu0 0.0
        %572 = vmatprep.subr.mxu0 0.0
        %573 = vmatpush2.msra.mxu0 0.0
        %574 = vmatprep.subr.mxu0 0.0
        %575 = vmatpush2.msra.mxu0 0.0
        %576 = vmatprep.subr.mxu0 0.0
        %577 = vmatpush2.msra.mxu0 0.0
        %578 = vmatprep.subr.mxu0 0.0
        %579 = vmatpush2.msra.mxu0 0.0
        %580 = vmatprep.subr.mxu0 0.0
        %581 = vmatpush2.msra.mxu0 0.0
        %582 = vmatprep.subr.mxu0 0.0
        %583 = vmatpush2.msra.mxu0 0.0
        %584 = vmatprep.subr.mxu0 0.0
        %585 = vmatpush2.msra.mxu0 0.0
        %586 = vmatprep.subr.mxu0 0.0
        %587 = vmatpush2.msra.mxu0 0.0
        %588 = vmatprep.subr.mxu0 0.0
        %589 = vmatpush2.msra.mxu0 0.0
        %590 = vmatprep.subr.mxu0 0.0
        %591 = vmatpush2.msra.mxu0 0.0
        %592 = vmatprep.subr.mxu0 0.0
        %593 = vmatpush2.msra.mxu0 0.0
        %594 = vmatprep.subr.mxu0 0.0
        %595 = vmatpush2.msra.mxu0 0.0
        %596 = vmatprep.subr.mxu0 0.0
        %597 = vmatpush2.msra.mxu0 0.0
        %598 = vmatprep.subr.mxu0 0.0
        %599 = vmatpush2.msra.mxu0 0.0
        %600 = vmatprep.mubr.f32.mxu0 0.0
        %601 = vmatmul.mubr.f32.gmra.mxu0 %v515
        %v602 = vpop.f32.mrf.mxu0
        %v603 = vadd.f32 %v479, %v602
        %v604 = vpop.f32.mrf.mxu0
        %605 = vmatprep.mubr.f32.mxu0 0.0
        %606 = vmatmul.mubr.f32.gmra.mxu0 %v518
        %v607 = vpop.f32.mrf.mxu0
        %v608 = vadd.f32 %v484, %v607
        %v609 = vpop.f32.mrf.mxu0
        %610 = vmatprep.mubr.f32.mxu0 0.0
        %611 = vmatmul.mubr.f32.gmra.mxu0 %v521
        %v612 = vpop.f32.mrf.mxu0
        %v613 = vadd.f32 %v489, %v612
        %v614 = vpop.f32.mrf.mxu0
        %615 = vmatprep.mubr.f32.mxu0 0.0
        %616 = vmatmul.mubr.f32.gmra.mxu0 %v524
        %v617 = vpop.f32.mrf.mxu0
        %v618 = vadd.f32 %v494, %v617
        %v619 = vpop.f32.mrf.mxu0
        %620 = vmatprep.mubr.f32.mxu0 0.0
        %621 = vmatmul.mubr.f32.gmra.mxu0 %v527
        %v622 = vpop.f32.mrf.mxu0
        %v623 = vadd.f32 %v499, %v622
        %v624 = vpop.f32.mrf.mxu0
        %625 = vmatprep.mubr.f32.mxu0 0.0
        %626 = vmatmul.mubr.f32.gmra.mxu0 %v530
        %v627 = vpop.f32.mrf.mxu0
        %v628 = vadd.f32 %v504, %v627
        %v629 = vpop.f32.mrf.mxu0
        %630 = vdwg.mxu0
        %v631 = vlaneseq
        %v632 = vshrl.u32 %v631, 7
        %v633 = vsub.s32 0, %v632
        %v634 = vrot.slane %v228, %v633
        %v635 = vadd.f32 %v603, %v634
        %v636 = vadd.f32 %v608, %v634
        %v637 = vadd.f32 %v613, %v634
        %v638 = vadd.f32 %v618, %v634
        %v639 = vadd.f32 %v623, %v634
        %v640 = vadd.f32 %v628, %v634
        %v641 = vtanh.pop %v635
        %v642 = vtanh.pop %v636
        %v643 = vtanh.pop %v637
        %v644 = vtanh.pop %v638
        %v645 = vtanh.pop %v639
        %v646 = vtanh.pop %v640
        %v647 = vlaneseq
        %v648 = vshrl.u32 %v647, 7
        %v649 = vsub.s32 1, %v648
        %v650 = vrot.slane %v228, %v649
        %v652 = vsel %vm393, %v641, 0
        %v655 = vsel %vm393, %v642, 0
        %v658 = vsel %vm393, %v643, 0
        %v661 = vsel %vm393, %v644, 0
        %v664 = vsel %vm393, %v645, 0
        %v667 = vsel %vm393, %v646, 0
        %669 = vmatprep.subr.mxu0 0.0
        %670 = vmatpush1.msra.mxu0 0.0
        %671 = vmatprep.subr.mxu0 0.0
        %672 = vmatpush1.msra.mxu0 0.0
        %673 = vmatprep.subr.mxu0 0.0
        %674 = vmatpush1.msra.mxu0 0.0
        %675 = vmatprep.subr.mxu0 0.0
        %676 = vmatpush1.msra.mxu0 0.0
        %677 = vmatprep.subr.mxu0 0.0
        %678 = vmatpush1.msra.mxu0 0.0
        %679 = vmatprep.subr.mxu0 0.0
        %680 = vmatpush1.msra.mxu0 0.0
        %681 = vmatprep.subr.mxu0 0.0
        %682 = vmatpush1.msra.mxu0 0.0
        %683 = vmatprep.subr.mxu0 0.0
        %684 = vmatpush1.msra.mxu0 0.0
        %685 = vmatprep.subr.mxu0 0.0
        %686 = vmatpush1.msra.mxu0 0.0
        %687 = vmatprep.subr.mxu0 0.0
        %688 = vmatpush1.msra.mxu0 0.0
        %689 = vmatprep.subr.mxu0 0.0
        %690 = vmatpush1.msra.mxu0 0.0
        %691 = vmatprep.subr.mxu0 0.0
        %692 = vmatpush1.msra.mxu0 0.0
        %693 = vmatprep.subr.mxu0 0.0
        %694 = vmatpush1.msra.mxu0 %v227
        %695 = vmatprep.subr.mxu0 0.0
        %696 = vmatpush1.msra.mxu0 %v226
        %697 = vmatprep.subr.mxu0 0.0
        %698 = vmatpush1.msra.mxu0 %v225
        %699 = vmatprep.subr.mxu0 0.0
        %700 = vmatpush1.msra.mxu0 %v224
        %701 = vmatprep.subr.mxu0 0.0
        %702 = vmatpush2.msra.mxu0 0.0
        %703 = vmatprep.subr.mxu0 0.0
        %704 = vmatpush2.msra.mxu0 0.0
        %705 = vmatprep.subr.mxu0 0.0
        %706 = vmatpush2.msra.mxu0 0.0
        %707 = vmatprep.subr.mxu0 0.0
        %708 = vmatpush2.msra.mxu0 0.0
        %709 = vmatprep.subr.mxu0 0.0
        %710 = vmatpush2.msra.mxu0 0.0
        %711 = vmatprep.subr.mxu0 0.0
        %712 = vmatpush2.msra.mxu0 0.0
        %713 = vmatprep.subr.mxu0 0.0
        %714 = vmatpush2.msra.mxu0 0.0
        %715 = vmatprep.subr.mxu0 0.0
        %716 = vmatpush2.msra.mxu0 0.0
        %717 = vmatprep.subr.mxu0 0.0
        %718 = vmatpush2.msra.mxu0 0.0
        %719 = vmatprep.subr.mxu0 0.0
        %720 = vmatpush2.msra.mxu0 0.0
        %721 = vmatprep.subr.mxu0 0.0
        %722 = vmatpush2.msra.mxu0 0.0
        %723 = vmatprep.subr.mxu0 0.0
        %724 = vmatpush2.msra.mxu0 0.0
        %725 = vmatprep.subr.mxu0 0.0
        %726 = vmatpush2.msra.mxu0 0.0
        %727 = vmatprep.subr.mxu0 0.0
        %728 = vmatpush2.msra.mxu0 0.0
        %729 = vmatprep.subr.mxu0 0.0
        %730 = vmatpush2.msra.mxu0 0.0
        %731 = vmatprep.subr.mxu0 0.0
        %732 = vmatpush2.msra.mxu0 0.0
        %733 = vmatprep.mubr.f32.mxu0 0.0
        %734 = vmatmul.mubr.f32.gmra.mxu0 %v652
        %v735 = vpop.f32.mrf.mxu0
        %v736 = vadd.f32 %v650, %v735
        %v737 = vpop.f32.mrf.mxu0
        %738 = vmatprep.mubr.f32.mxu0 0.0
        %739 = vmatmul.mubr.f32.gmra.mxu0 %v655
        %v740 = vpop.f32.mrf.mxu0
        %v741 = vadd.f32 %v650, %v740
        %v742 = vpop.f32.mrf.mxu0
        %743 = vmatprep.mubr.f32.mxu0 0.0
        %744 = vmatmul.mubr.f32.gmra.mxu0 %v658
        %v745 = vpop.f32.mrf.mxu0
        %v746 = vadd.f32 %v650, %v745
        %v747 = vpop.f32.mrf.mxu0
        %748 = vmatprep.mubr.f32.mxu0 0.0
        %749 = vmatmul.mubr.f32.gmra.mxu0 %v661
        %v750 = vpop.f32.mrf.mxu0
        %v751 = vadd.f32 %v650, %v750
        %v752 = vpop.f32.mrf.mxu0
        %753 = vmatprep.mubr.f32.mxu0 0.0
        %754 = vmatmul.mubr.f32.gmra.mxu0 %v664
        %v755 = vpop.f32.mrf.mxu0
        %v756 = vadd.f32 %v650, %v755
        %v757 = vpop.f32.mrf.mxu0
        %758 = vmatprep.mubr.f32.mxu0 0.0
        %759 = vmatmul.mubr.f32.gmra.mxu0 %v667
        %v760 = vpop.f32.mrf.mxu0
        %v761 = vadd.f32 %v650, %v760
        %v762 = vpop.f32.mrf.mxu0
        %763 = vdwg.mxu0
        %v764 = vtanh.pop %v736
        %v765 = vtanh.pop %v741
        %v766 = vtanh.pop %v746
        %v767 = vtanh.pop %v751
        %v768 = vtanh.pop %v756
        %v769 = vtanh.pop %v761
        %v770 = vmul.u32 %v230, 6
        %vm771 = vcmp.ge.s32.totalorder %v237, %v770
        %v772 = vadd.s32 %v770, 6
        %vm773 = vcmp.lt.s32.totalorder %v237, %v772
        %vm774 = vmand %vm771, %vm773
        %v775 = vsel %vm774, 0.16666667, 0.0
        %776 = vst.msk [vmem:[%s217] sm:$0xff] %vm393, %v764
        %777 = vst.msk [vmem:[%s217 + $0x8] sm:$0xff] %vm393, %v765
        %778 = vst.msk [vmem:[%s217 + $0x10] sm:$0xff] %vm393, %v766
        %779 = vst.msk [vmem:[%s217 + $0x18] sm:$0xff] %vm393, %v767
        %780 = vst.msk [vmem:[%s217 + $0x20] sm:$0xff] %vm393, %v768
        %781 = vst.msk [vmem:[%s217 + $0x28] sm:$0xff] %vm393, %v769
        %vm782 = vcmask 392192
        %v784 = vsel %vm782, %v775, 0
        %786 = vmatprep.subr.mxu0 0.0
        %787 = vmatpush1.msra.mxu0 0.0
        %788 = vmatprep.subr.mxu0 0.0
        %789 = vmatpush1.msra.mxu0 0.0
        %790 = vmatprep.subr.mxu0 0.0
        %791 = vmatpush1.msra.mxu0 0.0
        %792 = vmatprep.subr.mxu0 0.0
        %793 = vmatpush1.msra.mxu0 0.0
        %794 = vmatprep.subr.mxu0 0.0
        %795 = vmatpush1.msra.mxu0 0.0
        %796 = vmatprep.subr.mxu0 0.0
        %797 = vmatpush1.msra.mxu0 0.0
        %798 = vmatprep.subr.mxu0 0.0
        %799 = vmatpush1.msra.mxu0 0.0
        %800 = vmatprep.subr.mxu0 0.0
        %801 = vmatpush1.msra.mxu0 0.0
        %802 = vmatprep.subr.mxu0 0.0
        %803 = vmatpush1.msra.mxu0 0.0
        %804 = vmatprep.subr.mxu0 0.0
        %805 = vmatpush1.msra.mxu0 0.0
        %806 = vmatprep.subr.mxu0 0.0
        %807 = vmatpush1.msra.mxu0 %v769
        %808 = vmatprep.subr.mxu0 0.0
        %809 = vmatpush1.msra.mxu0 %v768
        %810 = vmatprep.subr.mxu0 0.0
        %811 = vmatpush1.msra.mxu0 %v767
        %812 = vmatprep.subr.mxu0 0.0
        %813 = vmatpush1.msra.mxu0 %v766
        %814 = vmatprep.subr.mxu0 0.0
        %815 = vmatpush1.msra.mxu0 %v765
        %816 = vmatprep.subr.mxu0 0.0
        %817 = vmatpush1.msra.mxu0 %v764
        %818 = vmatprep.subr.mxu0 0.0
        %819 = vmatpush2.msra.mxu0 0.0
        %820 = vmatprep.subr.mxu0 0.0
        %821 = vmatpush2.msra.mxu0 0.0
        %822 = vmatprep.subr.mxu0 0.0
        %823 = vmatpush2.msra.mxu0 0.0
        %824 = vmatprep.subr.mxu0 0.0
        %825 = vmatpush2.msra.mxu0 0.0
        %826 = vmatprep.subr.mxu0 0.0
        %827 = vmatpush2.msra.mxu0 0.0
        %828 = vmatprep.subr.mxu0 0.0
        %829 = vmatpush2.msra.mxu0 0.0
        %830 = vmatprep.subr.mxu0 0.0
        %831 = vmatpush2.msra.mxu0 0.0
        %832 = vmatprep.subr.mxu0 0.0
        %833 = vmatpush2.msra.mxu0 0.0
        %834 = vmatprep.subr.mxu0 0.0
        %835 = vmatpush2.msra.mxu0 0.0
        %836 = vmatprep.subr.mxu0 0.0
        %837 = vmatpush2.msra.mxu0 0.0
        %838 = vmatprep.subr.mxu0 0.0
        %839 = vmatpush2.msra.mxu0 0.0
        %840 = vmatprep.subr.mxu0 0.0
        %841 = vmatpush2.msra.mxu0 0.0
        %842 = vmatprep.subr.mxu0 0.0
        %843 = vmatpush2.msra.mxu0 0.0
        %844 = vmatprep.subr.mxu0 0.0
        %845 = vmatpush2.msra.mxu0 0.0
        %846 = vmatprep.subr.mxu0 0.0
        %847 = vmatpush2.msra.mxu0 0.0
        %848 = vmatprep.subr.mxu0 0.0
        %849 = vmatpush2.msra.mxu0 0.0
        %850 = vmatprep.mubr.f32.mxu0 0.0
        %851 = vmatmul.mubr.f32.gmra.mxu0 %v784
        %v852 = vpop.f32.mrf.mxu0
        %v853 = vadd.f32 0.0, %v852
        %v854 = vpop.f32.mrf.mxu0
        %855 = vdwg.mxu0
        %856 = vst.msk [vmem:[%s206] sm:$0xff] %vm393, %v853
        %s857 = smul.u32 6, %s26
        %p858 = scmp.lt.s32.totalorder %s857, 23
        %s859 = scalar_select %p858, %s857, 23
        %s860 = smul.addr %s859, 8
        %s861 = scalar_lea.vmem %s4, %s860
        %s862 = sand.u32 %s128, 1
        %s863 = scalar_lea.sflag [#allocation5], %s862
        %s864 = sand.u32 %s128, 1
        %s865 = smul.addr %s864, 8
        %s866 = scalar_lea.vmem [#allocation4], %s865
        // Predicated region
        $region33: #{tpu_custom_call.1} parent=31 // pred_check
          %p867 = pneg %p112
        $region34: #{tpu_custom_call.1} parent=31 // pred_check_branch
          %869 = sbr.rel (%p867) target = $region36
        $region35: #{tpu_custom_call.1} parent=31 // pred_region
          %s870 = smul.u32 6, %s26
        $region36: #{tpu_custom_call.1} parent=31 // pred_fallthru
          _
        // Predicated region
        $region37: #{tpu_custom_call.1} parent=31 // pred_check
          %p871 = pneg %p138
        $region38: #{tpu_custom_call.1} parent=31 // pred_check_branch
          %873 = sbr.rel (%p871) target = $region40
        $region39: #{tpu_custom_call.1} parent=31 // pred_region
          %s875 = ssub.s32 128, 128
          %876 = vsyncadd %s863, %s875
          %s877 = smul.addr %s26, 128
          %s878 = scalar_lea.hbm %s5, %s877
          %s880 = sshll.u32 %s866, 4
          %s881 = int_to_ptr.vmem [resolvable:$true] %s880
          %883 = dma.vmem_to_hbm [thread:$0]  %s881, 128, %s878, %s863
        $region40: #{tpu_custom_call.1} parent=31 // pred_fallthru
          _
      $region32: #{tpu_custom_call.1} parent=5 // pred_fallthru
        _
      %p884 = scmp.le.s32.totalorder 2, %s21
      // Predicated region
      $region41: #{tpu_custom_call.1} parent=5 // pred_check
        %p885 = pneg %p884
      $region42: #{tpu_custom_call.1} parent=5 // pred_check_branch
        %887 = sbr.rel (%p885) target = $region44
      $region43: #{tpu_custom_call.1} parent=5 // pred_region
        %s888 = ssub.s32 %s21, 2
        // Predicated region
        $region45: #{tpu_custom_call.1} parent=43 // pred_check
          %p889 = pneg %p118
        $region46: #{tpu_custom_call.1} parent=43 // pred_check_branch
          %891 = sbr.rel (%p889) target = $region48
        $region47: #{tpu_custom_call.1} parent=43 // pred_region
          %s892 = smul.u32 6, %s27
          %p893 = scmp.lt.s32.totalorder %s892, 23
          %s894 = scalar_select %p893, %s892, 23
          %s895 = smul.addr %s894, 8
          %s896 = scalar_lea.vmem %s4, %s895
        $region48: #{tpu_custom_call.1} parent=43 // pred_fallthru
          _
        // Predicated region
        $region49: #{tpu_custom_call.1} parent=43 // pred_check
          %p897 = pneg %p144
        $region50: #{tpu_custom_call.1} parent=43 // pred_check_branch
          %899 = sbr.rel (%p897) target = $region52
        $region51: #{tpu_custom_call.1} parent=43 // pred_region
          %s900 = sand.u32 %s129, 1
          %s901 = scalar_lea.sflag [#allocation5], %s900
          %s902 = sand.u32 %s129, 1
          %s903 = smul.addr %s902, 8
          %s904 = scalar_lea.vmem [#allocation4], %s903
          %905 = dma.done %s901, 128
        $region52: #{tpu_custom_call.1} parent=43 // pred_fallthru
          _
      $region44: #{tpu_custom_call.1} parent=5 // pred_fallthru
        _
    $region6: #{tpu_custom_call.1} parent=1 // loop_footer
      %s25 = sadd.s32 1, %s21
    $region7: #{tpu_custom_call.1} parent=1 // loop_footer_branch
      %20 = sbr.rel target = $region3
    $region8: #{tpu_custom_call.1} parent=1 // loop_exit
      _
    %906 = vsyncpa [#allocation5], 1
    %s907 = scalar_lea.sflag [#allocation5], 1
    %908 = vsyncpa %s907, 1

</llo_original>
